<compile_context>
chip_gen: v7x
topology: tpu7x:2x2x1
jax: 0.10.0
libtpu: 0.0.40
codegen_flags: <defaults>
</compile_context>

<pallas_src>
import functools

import jax
import jax.numpy as jnp
from jax.experimental import pallas as pl
from jax.experimental.pallas import tpu as pltpu


def _round_up(x, m):
    return ((x + m - 1) // m) * m


def titanic_mlp_kernel(xt_ref, w1_ref, b1_ref, w2_ref, b2_ref, w3_ref, b3_ref, o_ref):
    """Fused MLP forward on one batch tile, transposed (feature-major) layout.

    xt_ref : (D, TB)  bf16   -- batch tile of x, transposed (lane axis = batch)
    w1_ref : (16, D)  bf16   -- PyTorch (out, in) layout
    b1_ref : (16, 1)  f32
    w2_ref : (8, 16)  bf16
    b2_ref : (8, 1)   f32
    w3_ref : (1, 8)   bf16
    b3_ref : (1, 1)   f32
    o_ref  : (1, TB)  f32    -- lane-dense output (sigmoid probabilities)
    """
    xt = xt_ref[...]                                                   # (D, TB) bf16

    # layer1: (16, D) @ (D, TB) on the MXU (bf16 inputs, f32 accumulate)
    h1 = jnp.dot(w1_ref[...], xt, preferred_element_type=jnp.float32)  # (16, TB) f32
    h1 = jnp.maximum(h1 + b1_ref[...], 0.0)

    # layer2: (8, 16) @ (16, TB); activations kept in f32
    w2 = w2_ref[...].astype(jnp.float32)
    h2 = jnp.dot(w2, h1, preferred_element_type=jnp.float32)           # (8, TB) f32
    h2 = jnp.maximum(h2 + b2_ref[...], 0.0)

    # output layer: (1, 8) @ (8, TB) -> (1, TB), lane axis stays batch-dense
    w3 = w3_ref[...].astype(jnp.float32)
    z = jnp.dot(w3, h2, preferred_element_type=jnp.float32) + b3_ref[...]  # (1, TB)

    # sigmoid: exp on EUP, approx reciprocal also on EUP (VPU stays nearly idle)
    o_ref[...] = pl.reciprocal(1.0 + jnp.exp(-z), approx=True)


def titanic_forward(x, params, *, tb=1024):
    """Run the fused Pallas kernel over the batch, tiled along the batch axis.

    x      : (B, input_dim) float32 (cast to bf16 for the HBM stream)
    params : (w1, b1, w2, b2, w3, b3) as produced by init_params
    tb     : batch-tile size (rounded/clipped to a multiple of 128)
    returns: (B, 1) float32 probabilities, matching the PyTorch module.
    """
    w1, b1, w2, b2, w3, b3 = params
    B, D = x.shape

    tb = max(128, min(int(tb), _round_up(B, 128)))
    tb = _round_up(tb, 128)
    B_pad = _round_up(B, tb)
    n_tiles = B_pad // tb

    # Layout plumbing: bf16 + transpose + pad so the kernel sees a lane-dense
    # (D, B_pad) feature-major slab.  Padded columns are zeros (discarded below).
    xt = jnp.pad(x.astype(jnp.bfloat16).T, ((0, 0), (0, B_pad - B)))

    flops = 2 * B_pad * (D * 16 + 16 * 8 + 8 * 1)
    bytes_accessed = (
        xt.size * 2                                   # bf16 x stream (dominant)
        + (w1.size + w2.size + w3.size) * 2           # bf16 weights
        + (b1.size + b2.size + b3.size) * 4           # f32 biases
        + B_pad * 4                                   # f32 output
    )
    cost = pl.CostEstimate(
        flops=flops,
        transcendentals=2 * B_pad,                    # exp + approx reciprocal
        bytes_accessed=bytes_accessed,
    )

    out_t = pl.pallas_call(
        titanic_mlp_kernel,
        out_shape=jax.ShapeDtypeStruct((1, B_pad), jnp.float32),
        grid=(n_tiles,),
        in_specs=[
            pl.BlockSpec((D, tb), lambda i: (0, i)),    # x tile, auto-pipelined
            pl.BlockSpec((16, D), lambda i: (0, 0)),    # weights/biases: same block
            pl.BlockSpec((16, 1), lambda i: (0, 0)),    #   every step -> stay resident
            pl.BlockSpec((8, 16), lambda i: (0, 0)),
            pl.BlockSpec((8, 1), lambda i: (0, 0)),
            pl.BlockSpec((1, 8), lambda i: (0, 0)),
            pl.BlockSpec((1, 1), lambda i: (0, 0)),
        ],
        out_specs=pl.BlockSpec((1, tb), lambda i: (0, i)),
        compiler_params=pltpu.CompilerParams(
            dimension_semantics=("parallel",),          # megacore split on v7x
            vmem_limit_bytes=32 * 1024 * 1024,
        ),
        cost_estimate=cost,
    )(xt, w1, b1, w2, b2, w3, b3)

    # Back to the PyTorch-facing shape.
    return out_t[0, :B].reshape(B, 1)


def init_params(key, input_dim):
    """nn.Linear-style init.  Weights kept in PyTorch (out, in) layout, bf16;
    biases kept (out, 1) f32 for clean lane-broadcast in the transposed kernel."""
    ks = jax.random.split(key, 6)

    def uniform(k, shape, fan_in):
        bound = 1.0 / jnp.sqrt(fan_in)
        return jax.random.uniform(k, shape, jnp.float32, -bound, bound)

    w1 = uniform(ks[0], (16, input_dim), input_dim).astype(jnp.bfloat16)
    b1 = uniform(ks[1], (16, 1), input_dim)
    w2 = uniform(ks[2], (8, 16), 16).astype(jnp.bfloat16)
    b2 = uniform(ks[3], (8, 1), 16)
    w3 = uniform(ks[4], (1, 8), 8).astype(jnp.bfloat16)
    b3 = uniform(ks[5], (1, 1), 8)
    return (w1, b1, w2, b2, w3, b3)


def reference_forward(x, params):
    """Pure-JAX reference (same bf16-quantized inputs/weights, f32 math)."""
    w1, b1, w2, b2, w3, b3 = params
    xf = x.astype(jnp.bfloat16).astype(jnp.float32)
    h1 = jnp.maximum(xf @ w1.astype(jnp.float32).T + b1.T, 0.0)
    h2 = jnp.maximum(h1 @ w2.astype(jnp.float32).T + b2.T, 0.0)
    z = h2 @ w3.astype(jnp.float32).T + b3.T
    return jax.nn.sigmoid(z)


if __name__ == "__main__":
    key = jax.random.PRNGKey(0)
    k_x, k_p = jax.random.split(key)

    batch = 1000        # non-multiple of the tile -> exercises padding + slicing
    input_dim = 8       # Titanic tabular features

    x = jax.random.normal(k_x, (batch, input_dim), jnp.float32)
    params = init_params(k_p, input_dim)

    # tb=256 -> 4-step grid at this batch, exercising the pipelined / parallel path.
    fwd = jax.jit(functools.partial(titanic_forward, tb=256))
    out = jax.block_until_ready(fwd(x, params))

    ref = reference_forward(x, params)
    assert out.shape == (batch, 1)
    max_err = float(jnp.max(jnp.abs(out - ref)))
    assert max_err < 2e-3, f"mismatch vs JAX reference: max abs err {max_err}"

    print("KERNEL_OK")
</pallas_src>

<mosaic_0001>
module attributes {stable_mosaic.version = 11 : i64} {
  func.func @titanic_mlp_kernel(%arg0: i32, %arg1: memref<8x256xbf16, #tpu.memory_space<vmem>>, %arg2: memref<16x8xbf16, #tpu.memory_space<vmem>>, %arg3: memref<16x1xf32, #tpu.memory_space<vmem>>, %arg4: memref<8x16xbf16, #tpu.memory_space<vmem>>, %arg5: memref<8x1xf32, #tpu.memory_space<vmem>>, %arg6: memref<1x8xbf16, #tpu.memory_space<vmem>>, %arg7: memref<1x1xf32, #tpu.memory_space<vmem>>, %arg8: memref<1x256xf32, #tpu.memory_space<vmem>>) attributes {dimension_semantics = [#tpu.dimension_semantics<parallel>], iteration_bounds = array<i64: 4>, scalar_prefetch = 0 : i64, scratch_operands = 0 : i64, tpu.core_type = #tpu.core_type<tc>, window_params = [{transform_indices = @transform_0, window_bounds = array<i64: 8, 256>}, {pipeline_mode = #tpu.pipeline_mode<synchronous>, transform_indices = @transform_1, window_bounds = array<i64: 16, 8>}, {pipeline_mode = #tpu.pipeline_mode<synchronous>, transform_indices = @transform_2, window_bounds = array<i64: 16, 1>}, {pipeline_mode = #tpu.pipeline_mode<synchronous>, transform_indices = @transform_3, window_bounds = array<i64: 8, 16>}, {pipeline_mode = #tpu.pipeline_mode<synchronous>, transform_indices = @transform_4, window_bounds = array<i64: 8, 1>}, {pipeline_mode = #tpu.pipeline_mode<synchronous>, transform_indices = @transform_5, window_bounds = array<i64: 1, 8>}, {pipeline_mode = #tpu.pipeline_mode<synchronous>, transform_indices = @transform_6, window_bounds = array<i64: 1, 1>}, {transform_indices = @transform_7, window_bounds = array<i64: 1, 256>}]} {
    %c0 = arith.constant 0 : index
    %c0_0 = arith.constant 0 : index
    %0 = vector.load %arg1[%c0, %c0_0] : memref<8x256xbf16, #tpu.memory_space<vmem>>, vector<8x256xbf16>
    %c0_1 = arith.constant 0 : index
    %c0_2 = arith.constant 0 : index
    %1 = vector.load %arg2[%c0_1, %c0_2] : memref<16x8xbf16, #tpu.memory_space<vmem>>, vector<16x8xbf16>
    %cst = arith.constant dense<0.000000e+00> : vector<16x256xf32>
    %2 = tpu.matmul %1, %0, %cst {dimension_numbers = #tpu.dot_dimension_numbers<[1], [0], [0], [1], [0, 0, 1, 1], [], []>} : vector<16x8xbf16>, vector<8x256xbf16>, vector<16x256xf32> -> vector<16x256xf32>
    %c0_3 = arith.constant 0 : index
    %c0_4 = arith.constant 0 : index
    %3 = vector.load %arg3[%c0_3, %c0_4] : memref<16x1xf32, #tpu.memory_space<vmem>>, vector<16x1xf32>
    %4 = vector.broadcast %3 : vector<16x1xf32> to vector<16x256xf32>
    %5 = arith.addf %2, %4 : vector<16x256xf32>
    %cst_5 = arith.constant 0.000000e+00 : f32
    %6 = vector.broadcast %cst_5 : f32 to vector<16x256xf32>
    %7 = arith.maximumf %5, %6 : vector<16x256xf32>
    %c0_6 = arith.constant 0 : index
    %c0_7 = arith.constant 0 : index
    %8 = vector.load %arg4[%c0_6, %c0_7] : memref<8x16xbf16, #tpu.memory_space<vmem>>, vector<8x16xbf16>
    %9 = arith.extf %8 : vector<8x16xbf16> to vector<8x16xf32>
    %cst_8 = arith.constant dense<0.000000e+00> : vector<8x256xf32>
    %10 = tpu.matmul %9, %7, %cst_8 {dimension_numbers = #tpu.dot_dimension_numbers<[1], [0], [0], [1], [0, 0, 1, 1], [], []>} : vector<8x16xf32>, vector<16x256xf32>, vector<8x256xf32> -> vector<8x256xf32>
    %c0_9 = arith.constant 0 : index
    %c0_10 = arith.constant 0 : index
    %11 = vector.load %arg5[%c0_9, %c0_10] : memref<8x1xf32, #tpu.memory_space<vmem>>, vector<8x1xf32>
    %12 = vector.broadcast %11 : vector<8x1xf32> to vector<8x256xf32>
    %13 = arith.addf %10, %12 : vector<8x256xf32>
    %cst_11 = arith.constant 0.000000e+00 : f32
    %14 = vector.broadcast %cst_11 : f32 to vector<8x256xf32>
    %15 = arith.maximumf %13, %14 : vector<8x256xf32>
    %c0_12 = arith.constant 0 : index
    %c0_13 = arith.constant 0 : index
    %16 = vector.load %arg6[%c0_12, %c0_13] : memref<1x8xbf16, #tpu.memory_space<vmem>>, vector<1x8xbf16>
    %17 = arith.extf %16 : vector<1x8xbf16> to vector<1x8xf32>
    %cst_14 = arith.constant dense<0.000000e+00> : vector<1x256xf32>
    %18 = tpu.matmul %17, %15, %cst_14 {dimension_numbers = #tpu.dot_dimension_numbers<[1], [0], [0], [1], [0, 0, 1, 1], [], []>} : vector<1x8xf32>, vector<8x256xf32>, vector<1x256xf32> -> vector<1x256xf32>
    %c0_15 = arith.constant 0 : index
    %c0_16 = arith.constant 0 : index
    %19 = vector.load %arg7[%c0_15, %c0_16] : memref<1x1xf32, #tpu.memory_space<vmem>>, vector<1x1xf32>
    %20 = vector.broadcast %19 : vector<1x1xf32> to vector<1x256xf32>
    %21 = arith.addf %18, %20 : vector<1x256xf32>
    %cst_17 = arith.constant 0.000000e+00 : f32
    %22 = vector.broadcast %cst_17 : f32 to vector<1x256xf32>
    %23 = arith.subf %22, %21 : vector<1x256xf32>
    %24 = math.exp %23 : vector<1x256xf32>
    %cst_18 = arith.constant 1.000000e+00 : f32
    %25 = vector.broadcast %cst_18 : f32 to vector<1x256xf32>
    %26 = arith.addf %25, %24 : vector<1x256xf32>
    %27 = tpu.reciprocal %26 {approx = true} : vector<1x256xf32> -> vector<1x256xf32>
    %c0_19 = arith.constant 0 : index
    %c0_20 = arith.constant 0 : index
    %28 = vector.load %arg8[%c0_19, %c0_20] : memref<1x256xf32, #tpu.memory_space<vmem>>, vector<1x256xf32>
    tpu.vector_store %arg8[%c0_19, %c0_20], %27 {strides = array<i32>} : memref<1x256xf32, #tpu.memory_space<vmem>>, vector<1x256xf32>,
    return
  }
  func.func @transform_0(%arg0: i32) -> (i32, i32) {
    %c0_i32 = arith.constant 0 : i32
    %c0_i32_0 = arith.constant 0 : i32
    return %c0_i32, %arg0 : i32, i32
  }
  func.func @transform_1(%arg0: i32) -> (i32, i32) {
    %c0_i32 = arith.constant 0 : i32
    %c0_i32_0 = arith.constant 0 : i32
    %c0_i32_1 = arith.constant 0 : i32
    return %c0_i32, %c0_i32_0 : i32, i32
  }
  func.func @transform_2(%arg0: i32) -> (i32, i32) {
    %c0_i32 = arith.constant 0 : i32
    %c0_i32_0 = arith.constant 0 : i32
    %c0_i32_1 = arith.constant 0 : i32
    return %c0_i32, %c0_i32_0 : i32, i32
  }
  func.func @transform_3(%arg0: i32) -> (i32, i32) {
    %c0_i32 = arith.constant 0 : i32
    %c0_i32_0 = arith.constant 0 : i32
    %c0_i32_1 = arith.constant 0 : i32
    return %c0_i32, %c0_i32_0 : i32, i32
  }
  func.func @transform_4(%arg0: i32) -> (i32, i32) {
    %c0_i32 = arith.constant 0 : i32
    %c0_i32_0 = arith.constant 0 : i32
    %c0_i32_1 = arith.constant 0 : i32
    return %c0_i32, %c0_i32_0 : i32, i32
  }
  func.func @transform_5(%arg0: i32) -> (i32, i32) {
    %c0_i32 = arith.constant 0 : i32
    %c0_i32_0 = arith.constant 0 : i32
    %c0_i32_1 = arith.constant 0 : i32
    return %c0_i32, %c0_i32_0 : i32, i32
  }
  func.func @transform_6(%arg0: i32) -> (i32, i32) {
    %c0_i32 = arith.constant 0 : i32
    %c0_i32_0 = arith.constant 0 : i32
    %c0_i32_1 = arith.constant 0 : i32
    return %c0_i32, %c0_i32_0 : i32, i32
  }
  func.func @transform_7(%arg0: i32) -> (i32, i32) {
    %c0_i32 = arith.constant 0 : i32
    %c0_i32_0 = arith.constant 0 : i32
    return %c0_i32, %arg0 : i32, i32
  }
}

</mosaic_0001>

<llo_original>
// kernel: titanic_forward.1
$region0: #{titanic_forward.1}
  #allocation0 [shape = 'u32[]', space=smem, size = 0x4, offset = 0x4, fixed_abs, tag = 'smem constant byte address 0x4 - core index']
  #allocation1 [shape = 'u32[144,128]{1,0:T(1,128)}', space=vmem, size = 0x12000, scoped, tag = 'internal scratch']
  #allocation2 [shape = 'f32[1,1]{1,0:T(1,128)S(1)}', space=vmem, size = 0x200, scoped, tag = 'scoped memory for titanic_forward.1']
  %s0 = inlined_call_operand.vmem [shape: bf16[8,1024], index: 0, kind: input, shape index: {}]
  %s1 = inlined_call_operand.vmem [shape: bf16[16,8], index: 1, kind: input, shape index: {}]
  %s2 = inlined_call_operand.vmem [shape: f32[16,1], index: 2, kind: input, shape index: {}]
  %s3 = inlined_call_operand.vmem [shape: bf16[8,16], index: 3, kind: input, shape index: {}]
  %s4 = inlined_call_operand.vmem [shape: f32[8,1], index: 4, kind: input, shape index: {}]
  %s5 = inlined_call_operand.vmem [shape: bf16[1,8], index: 5, kind: input, shape index: {}]
  %s6 = inlined_call_operand.<no memory space> [shape: f32[1,1], index: 6, kind: input, shape index: {}]
  %s7 = inlined_call_operand.vmem [shape: f32[1,1024], index: 7, kind: output, shape index: {}]
  %s8 = sld [smem:[#allocation0]]
  $region61: #{titanic_forward.1} parent=0
    _
  %s10 = ssub.s32 1, %s8
  %s11 = scalar_select 0, %s10, %s8
  %v12 = vstv %s6
  %13 = vst [vmem:[#allocation2] sm:$0x1] %v12
  loop: start=0, step=1, limit=6
  $region2: #{titanic_forward.1} parent=0 // loop_pre_header
    _
  $region3: #{titanic_forward.1} parent=0 // loop_header
    %s15 = sphi 0, %s19
    %p16 = scmp.ge.s32.totalorder %s15, 6
    %s25 = sphi 0, %s27
    %s28 = sphi 0, %s25
    %s29 = sphi 0, %s28
    %s45 = sphi 0, %s29
    %s49 = sphi 0, %s49
    %s51 = sphi 0, %s49
    %s52 = sphi 0, %s51
    %s66 = sphi 0, %s52
    %s70 = sphi 0, %s70
    %s72 = sphi 0, %s70
    %s73 = sphi 0, %s72
    %s87 = sphi 0, %s73
    %s91 = sphi 0, %s91
    %s93 = sphi 0, %s91
    %s94 = sphi 0, %s93
    %s108 = sphi 0, %s94
    %s112 = sphi 0, %s112
    %s114 = sphi 0, %s112
    %s115 = sphi 0, %s114
    %s129 = sphi 0, %s115
    %s133 = sphi 0, %s133
    %s135 = sphi 0, %s133
    %s136 = sphi 0, %s135
    %s150 = sphi 0, %s136
    %s154 = sphi 0, %s154
    %s156 = sphi 0, %s154
    %s157 = sphi 0, %s156
    %s171 = sphi 0, %s157
    %s177 = sphi 0, %s179
    %s180 = sphi 0, %s177
    %s181 = sphi 0, %s180
    %s197 = sphi 0, %s181
  $region4: #{titanic_forward.1} parent=0 // loop_header_branch
    %18 = sbr.rel (%p16) target = $region8
  $region5: #{titanic_forward.1} parent=0 // loop_body
    %s20 = ssub.s32 %s15, 1
    %s21 = ssub.s32 %s15, 2
    %s22 = sadd.s32 %s15, 1
    %s23 = ssub.s32 %s15, %s22
    %p24 = scmp.eq.s32.totalorder %s23, 0
    %s26 = sadd.s32 %s25, 1
    %s27 = scalar_select %p24, %s25, %s26
    %p30 = pneg %p24
    %p31 = scmp.eq.s32.totalorder %s15, 3
    %p32 = por %p30, %p31
    %p33 = scmp.ne.s32.totalorder %s25, %s28
    %p34 = scmp.eq.s32.totalorder %s15, 0
    %p35 = por %p33, %p34
    %p36 = scmp.ne.s32.totalorder %s25, %s28
    %p37 = scmp.eq.s32.totalorder %s20, 3
    %p38 = por %p36, %p37
    %p39 = scmp.ne.s32.totalorder %s28, %s29
    %p40 = scmp.eq.s32.totalorder %s20, 0
    %p41 = por %p39, %p40
    %p42 = scmp.ne.s32.totalorder %s28, %s29
    %p43 = scmp.eq.s32.totalorder %s21, 3
    %p44 = por %p42, %p43
    %p46 = scmp.ne.s32.totalorder %s29, %s45
    %p47 = scmp.eq.s32.totalorder %s21, 0
    %p48 = por %p46, %p47
    %s50 = sadd.s32 %s49, 1
    %p53 = scmp.eq.s32.totalorder %s15, 3
    %p54 = scmp.ne.s32.totalorder %s49, %s51
    %p55 = scmp.eq.s32.totalorder %s15, 0
    %p56 = por %p54, %p55
    %p57 = scmp.ne.s32.totalorder %s49, %s51
    %p58 = scmp.eq.s32.totalorder %s20, 3
    %p59 = por %p57, %p58
    %p60 = scmp.ne.s32.totalorder %s51, %s52
    %p61 = scmp.eq.s32.totalorder %s20, 0
    %p62 = por %p60, %p61
    %p63 = scmp.ne.s32.totalorder %s51, %s52
    %p64 = scmp.eq.s32.totalorder %s21, 3
    %p65 = por %p63, %p64
    %p67 = scmp.ne.s32.totalorder %s52, %s66
    %p68 = scmp.eq.s32.totalorder %s21, 0
    %p69 = por %p67, %p68
    %s71 = sadd.s32 %s70, 1
    %p74 = scmp.eq.s32.totalorder %s15, 3
    %p75 = scmp.ne.s32.totalorder %s70, %s72
    %p76 = scmp.eq.s32.totalorder %s15, 0
    %p77 = por %p75, %p76
    %p78 = scmp.ne.s32.totalorder %s70, %s72
    %p79 = scmp.eq.s32.totalorder %s20, 3
    %p80 = por %p78, %p79
    %p81 = scmp.ne.s32.totalorder %s72, %s73
    %p82 = scmp.eq.s32.totalorder %s20, 0
    %p83 = por %p81, %p82
    %p84 = scmp.ne.s32.totalorder %s72, %s73
    %p85 = scmp.eq.s32.totalorder %s21, 3
    %p86 = por %p84, %p85
    %p88 = scmp.ne.s32.totalorder %s73, %s87
    %p89 = scmp.eq.s32.totalorder %s21, 0
    %p90 = por %p88, %p89
    %s92 = sadd.s32 %s91, 1
    %p95 = scmp.eq.s32.totalorder %s15, 3
    %p96 = scmp.ne.s32.totalorder %s91, %s93
    %p97 = scmp.eq.s32.totalorder %s15, 0
    %p98 = por %p96, %p97
    %p99 = scmp.ne.s32.totalorder %s91, %s93
    %p100 = scmp.eq.s32.totalorder %s20, 3
    %p101 = por %p99, %p100
    %p102 = scmp.ne.s32.totalorder %s93, %s94
    %p103 = scmp.eq.s32.totalorder %s20, 0
    %p104 = por %p102, %p103
    %p105 = scmp.ne.s32.totalorder %s93, %s94
    %p106 = scmp.eq.s32.totalorder %s21, 3
    %p107 = por %p105, %p106
    %p109 = scmp.ne.s32.totalorder %s94, %s108
    %p110 = scmp.eq.s32.totalorder %s21, 0
    %p111 = por %p109, %p110
    %s113 = sadd.s32 %s112, 1
    %p116 = scmp.eq.s32.totalorder %s15, 3
    %p117 = scmp.ne.s32.totalorder %s112, %s114
    %p118 = scmp.eq.s32.totalorder %s15, 0
    %p119 = por %p117, %p118
    %p120 = scmp.ne.s32.totalorder %s112, %s114
    %p121 = scmp.eq.s32.totalorder %s20, 3
    %p122 = por %p120, %p121
    %p123 = scmp.ne.s32.totalorder %s114, %s115
    %p124 = scmp.eq.s32.totalorder %s20, 0
    %p125 = por %p123, %p124
    %p126 = scmp.ne.s32.totalorder %s114, %s115
    %p127 = scmp.eq.s32.totalorder %s21, 3
    %p128 = por %p126, %p127
    %p130 = scmp.ne.s32.totalorder %s115, %s129
    %p131 = scmp.eq.s32.totalorder %s21, 0
    %p132 = por %p130, %p131
    %s134 = sadd.s32 %s133, 1
    %p137 = scmp.eq.s32.totalorder %s15, 3
    %p138 = scmp.ne.s32.totalorder %s133, %s135
    %p139 = scmp.eq.s32.totalorder %s15, 0
    %p140 = por %p138, %p139
    %p141 = scmp.ne.s32.totalorder %s133, %s135
    %p142 = scmp.eq.s32.totalorder %s20, 3
    %p143 = por %p141, %p142
    %p144 = scmp.ne.s32.totalorder %s135, %s136
    %p145 = scmp.eq.s32.totalorder %s20, 0
    %p146 = por %p144, %p145
    %p147 = scmp.ne.s32.totalorder %s135, %s136
    %p148 = scmp.eq.s32.totalorder %s21, 3
    %p149 = por %p147, %p148
    %p151 = scmp.ne.s32.totalorder %s136, %s150
    %p152 = scmp.eq.s32.totalorder %s21, 0
    %p153 = por %p151, %p152
    %s155 = sadd.s32 %s154, 1
    %p158 = scmp.eq.s32.totalorder %s15, 3
    %p159 = scmp.ne.s32.totalorder %s154, %s156
    %p160 = scmp.eq.s32.totalorder %s15, 0
    %p161 = por %p159, %p160
    %p162 = scmp.ne.s32.totalorder %s154, %s156
    %p163 = scmp.eq.s32.totalorder %s20, 3
    %p164 = por %p162, %p163
    %p165 = scmp.ne.s32.totalorder %s156, %s157
    %p166 = scmp.eq.s32.totalorder %s20, 0
    %p167 = por %p165, %p166
    %p168 = scmp.ne.s32.totalorder %s156, %s157
    %p169 = scmp.eq.s32.totalorder %s21, 3
    %p170 = por %p168, %p169
    %p172 = scmp.ne.s32.totalorder %s157, %s171
    %p173 = scmp.eq.s32.totalorder %s21, 0
    %p174 = por %p172, %p173
    %s175 = ssub.s32 %s15, %s22
    %p176 = scmp.eq.s32.totalorder %s175, 0
    %s178 = sadd.s32 %s177, 1
    %s179 = scalar_select %p176, %s177, %s178
    %p182 = pneg %p176
    %p183 = scmp.eq.s32.totalorder %s15, 3
    %p184 = por %p182, %p183
    %p185 = scmp.ne.s32.totalorder %s177, %s180
    %p186 = scmp.eq.s32.totalorder %s15, 0
    %p187 = por %p185, %p186
    %p188 = scmp.ne.s32.totalorder %s177, %s180
    %p189 = scmp.eq.s32.totalorder %s20, 3
    %p190 = por %p188, %p189
    %p191 = scmp.ne.s32.totalorder %s180, %s181
    %p192 = scmp.eq.s32.totalorder %s20, 0
    %p193 = por %p191, %p192
    %p194 = scmp.ne.s32.totalorder %s180, %s181
    %p195 = scmp.eq.s32.totalorder %s21, 3
    %p196 = por %p194, %p195
    %p198 = scmp.ne.s32.totalorder %s181, %s197
    %p199 = scmp.eq.s32.totalorder %s21, 0
    %p200 = por %p198, %p199
    %p201 = scmp.le.s32.totalorder 1, %s15
    %p202 = scmp.lt.s32.totalorder %s15, 5
    %p203 = pnand %p201, %p202
    %p204 = pneg %p203
    // Predicated region
    $region9: #{titanic_forward.1} parent=5 // pred_check
      _
    $region10: #{titanic_forward.1} parent=5 // pred_check_branch
      %206 = sbr.rel (%p203) target = $region12
    $region11: #{titanic_forward.1} parent=5 // pred_region
      %s207 = ssub.s32 %s15, 1
      // Predicated region
      $region13: #{titanic_forward.1} parent=11 // pred_check
        %p208 = pneg %p62
      $region14: #{titanic_forward.1} parent=11 // pred_check_branch
        %210 = sbr.rel (%p208) target = $region16
      $region15: #{titanic_forward.1} parent=11 // pred_region
        _
      $region16: #{titanic_forward.1} parent=11 // pred_fallthru
        _
      // Predicated region
      $region17: #{titanic_forward.1} parent=11 // pred_check
        %p211 = pneg %p83
      $region18: #{titanic_forward.1} parent=11 // pred_check_branch
        %213 = sbr.rel (%p211) target = $region20
      $region19: #{titanic_forward.1} parent=11 // pred_region
        _
      $region20: #{titanic_forward.1} parent=11 // pred_fallthru
        _
      // Predicated region
      $region21: #{titanic_forward.1} parent=11 // pred_check
        %p214 = pneg %p104
      $region22: #{titanic_forward.1} parent=11 // pred_check_branch
        %216 = sbr.rel (%p214) target = $region24
      $region23: #{titanic_forward.1} parent=11 // pred_region
        _
      $region24: #{titanic_forward.1} parent=11 // pred_fallthru
        _
      // Predicated region
      $region25: #{titanic_forward.1} parent=11 // pred_check
        %p217 = pneg %p125
      $region26: #{titanic_forward.1} parent=11 // pred_check_branch
        %219 = sbr.rel (%p217) target = $region28
      $region27: #{titanic_forward.1} parent=11 // pred_region
        _
      $region28: #{titanic_forward.1} parent=11 // pred_fallthru
        _
      // Predicated region
      $region29: #{titanic_forward.1} parent=11 // pred_check
        %p220 = pneg %p146
      $region30: #{titanic_forward.1} parent=11 // pred_check_branch
        %222 = sbr.rel (%p220) target = $region32
      $region31: #{titanic_forward.1} parent=11 // pred_region
        _
      $region32: #{titanic_forward.1} parent=11 // pred_fallthru
        _
      // Predicated region
      $region33: #{titanic_forward.1} parent=11 // pred_check
        %p223 = pneg %p167
      $region34: #{titanic_forward.1} parent=11 // pred_check_branch
        %225 = sbr.rel (%p223) target = $region36
      $region35: #{titanic_forward.1} parent=11 // pred_region
        _
      $region36: #{titanic_forward.1} parent=11 // pred_fallthru
        _
    $region12: #{titanic_forward.1} parent=5 // pred_fallthru
      _
    %p226 = scmp.lt.s32.totalorder %s15, 4
    // Predicated region
    $region37: #{titanic_forward.1} parent=5 // pred_check
      %p227 = pneg %p226
    $region38: #{titanic_forward.1} parent=5 // pred_check_branch
      %229 = sbr.rel (%p227) target = $region40
    $region39: #{titanic_forward.1} parent=5 // pred_region
      // Predicated region
      $region41: #{titanic_forward.1} parent=39 // pred_check
        %p230 = pneg %p35
      $region42: #{titanic_forward.1} parent=39 // pred_check_branch
        %232 = sbr.rel (%p230) target = $region44
      $region43: #{titanic_forward.1} parent=39 // pred_region
        %s233 = smul.u32 2, %s15
        %p234 = scmp.lt.s32.totalorder %s233, 7
        %s235 = scalar_select %p234, %s233, 7
        %s236 = smul.addr %s235, 4
        %s237 = scalar_lea.vmem %s0, %s236
        %s238 = smul.u32 2, %s15
      $region44: #{titanic_forward.1} parent=39 // pred_fallthru
        _
    $region40: #{titanic_forward.1} parent=5 // pred_fallthru
      _
    %p239 = scmp.le.s32.totalorder 1, %s15
    %p240 = scmp.lt.s32.totalorder %s15, 5
    %p241 = pnand %p239, %p240
    %p242 = pneg %p241
    // Predicated region
    $region45: #{titanic_forward.1} parent=5 // pred_check
      _
    $region46: #{titanic_forward.1} parent=5 // pred_check_branch
      %244 = sbr.rel (%p241) target = $region48
    $region47: #{titanic_forward.1} parent=5 // pred_region
      %s245 = ssub.s32 %s15, 1
      %s246 = smul.u32 2, %s20
      %p247 = scmp.lt.s32.totalorder %s246, 7
      %s248 = scalar_select %p247, %s246, 7
      %s249 = smul.addr %s248, 4
      %s250 = scalar_lea.vmem %s0, %s249
      %p251 = pneg %p41
      %p252 = pneg %p38
      %p253 = pneg %p62
      %p254 = pneg %p59
      %p255 = pneg %p83
      %p256 = pneg %p80
      %p257 = pneg %p104
      %p258 = pneg %p101
      %p259 = pneg %p125
      %p260 = pneg %p122
      %p261 = pneg %p146
      %p262 = pneg %p143
      %p263 = pneg %p167
      %p264 = pneg %p164
      %p265 = pneg %p193
      %p266 = pneg %p190
      %s267 = smul.u32 2, %s20
      %p268 = scmp.lt.s32.totalorder %s267, 7
      %s269 = scalar_select %p268, %s267, 7
      %s270 = scalar_lea.vmem %s7, %s269
      %s271 = smul.u32 2, %s20
      %p272 = scmp.lt.s32.totalorder %s271, 7
      %s273 = scalar_select %p272, %s271, 7
      %s274 = smul.addr %s273, 4
      %s275 = scalar_lea.vmem %s0, %s274
      %s276 = smul.u32 2, %s20
      %s277 = smul.u32 2, %s20
      %p278 = scmp.lt.s32.totalorder %s277, 7
      %s279 = scalar_select %p278, %s277, 7
      %s280 = scalar_lea.vmem %s7, %s279
      %s281 = smul.u32 2, %s20
      %v283 = vld [vmem:[%s275] sm:$0xff]
      %v284 = vld [vmem:[%s1] sm:$0xf]
      %v285 = vld [vmem:[%s1 + $0x4] sm:$0xf]
      %v286 = vld [vmem:[%s2] sm:$0xff]
      %v287 = vld [vmem:[%s2 + $0x8] sm:$0xff]
      %289 = vset.pattern.permute.xlu0 0
      %290 = vperm.xlu0 %289, %v286
      %v291 = vpop.permute.xlu0 %290
      %294 = vset.pattern.permute.xlu0 0
      %295 = vperm.xlu0 %294, %v287
      %v296 = vpop.permute.xlu0 %295
      %v300 = vunpack.c.l.b16 %v284
      %v301 = vunpack.c.l.b16 %v285
      %v302 = vpack.c.b16 %v301, %v300
      %v304 = vunpack.c.l.b16 %v283
      %v305 = vunpack.c.h.b16 %v283
      %v306 = vpack.c.b16 %v304, %v304
      %v307 = vpack.c.b16 %v305, %v305
      %vm308 = vcmask 64512
      %v310 = vsel %vm308, %v302, 0
      %vm312 = vcmask 1043456
      %v314 = vsel %vm312, %v306, 0
      %v317 = vsel %vm312, %v307, 0
      %319 = vmatprep.subr.bf16.mxu0 %v317
      %320 = vmatpush1.bf16.msra.mxu0 %v314
      %321 = vmatprep.subr.bf16.mxu0 0
      %322 = vmatpush1.bf16.msra.mxu0 0
      %323 = vmatprep.subr.bf16.mxu0 0
      %324 = vmatpush1.bf16.msra.mxu0 0
      %325 = vmatprep.subr.bf16.mxu0 0
      %326 = vmatpush1.bf16.msra.mxu0 0
      %327 = vmatprep.subr.bf16.mxu0 0
      %328 = vmatpush1.bf16.msra.mxu0 0
      %329 = vmatprep.subr.bf16.mxu0 0
      %330 = vmatpush1.bf16.msra.mxu0 0
      %331 = vmatprep.subr.bf16.mxu0 0
      %332 = vmatpush1.bf16.msra.mxu0 0
      %333 = vmatprep.subr.bf16.mxu0 0
      %334 = vmatpush1.bf16.msra.mxu0 0
      %335 = vmatprep.subr.bf16.mxu0 0
      %336 = vmatpush1.bf16.msra.mxu0 0
      %337 = vmatprep.subr.bf16.mxu0 0
      %338 = vmatpush1.bf16.msra.mxu0 0
      %339 = vmatprep.subr.bf16.mxu0 0
      %340 = vmatpush1.bf16.msra.mxu0 0
      %341 = vmatprep.subr.bf16.mxu0 0
      %342 = vmatpush1.bf16.msra.mxu0 0
      %343 = vmatprep.subr.bf16.mxu0 0
      %344 = vmatpush1.bf16.msra.mxu0 0
      %345 = vmatprep.subr.bf16.mxu0 0
      %346 = vmatpush1.bf16.msra.mxu0 0
      %347 = vmatprep.subr.bf16.mxu0 0
      %348 = vmatpush1.bf16.msra.mxu0 0
      %349 = vmatprep.subr.bf16.mxu0 0
      %350 = vmatpush1.bf16.msra.mxu0 0
      %351 = vmatprep.mubr.bf16.mxu0 0
      %352 = vmatmul.mubr.bf16.gmra.mrb[0].mxu0 %v310
      %v353 = vpop.f32.mrb[0].mxu0
      %v354 = vadd.f32 %v291, %v353
      %v355 = vpop.f32.mrb[0].mxu0
      %v356 = vadd.f32 %v291, %v355
      %v357 = vpop.f32.mrb[0].mxu0
      %v358 = vadd.f32 %v296, %v357
      %v359 = vpop.f32.mrb[0].mxu0
      %v360 = vadd.f32 %v296, %v359
      %361 = vdwg.mxu0
      %v362 = vmax.f32 %v354, 0.0
      %v363 = vmax.f32 %v356, 0.0
      %v364 = vmax.f32 %v358, 0.0
      %v365 = vmax.f32 %v360, 0.0
      %v366 = vld [vmem:[%s3] sm:$0xf]
      %v367 = vunpack.c.l.bf16 %v366
      %v368 = vld [vmem:[%s4] sm:$0xff]
      %370 = vset.pattern.permute.xlu0 0
      %371 = vperm.xlu0 %370, %v368
      %v372 = vpop.permute.xlu0 %371
      %vm374 = vcmask 130048
      %v376 = vsel %vm374, %v367, 0
      %378 = vmatprep.subr.mxu0 %v363
      %379 = vmatpush1.msra.mxu0 %v362
      %380 = vmatprep.subr.mxu0 %v365
      %381 = vmatpush1.msra.mxu0 %v364
      %382 = vmatprep.subr.mxu0 0.0
      %383 = vmatpush1.msra.mxu0 0.0
      %384 = vmatprep.subr.mxu0 0.0
      %385 = vmatpush1.msra.mxu0 0.0
      %386 = vmatprep.subr.mxu0 0.0
      %387 = vmatpush1.msra.mxu0 0.0
      %388 = vmatprep.subr.mxu0 0.0
      %389 = vmatpush1.msra.mxu0 0.0
      %390 = vmatprep.subr.mxu0 0.0
      %391 = vmatpush1.msra.mxu0 0.0
      %392 = vmatprep.subr.mxu0 0.0
      %393 = vmatpush1.msra.mxu0 0.0
      %394 = vmatprep.subr.mxu0 0.0
      %395 = vmatpush1.msra.mxu0 0.0
      %396 = vmatprep.subr.mxu0 0.0
      %397 = vmatpush1.msra.mxu0 0.0
      %398 = vmatprep.subr.mxu0 0.0
      %399 = vmatpush1.msra.mxu0 0.0
      %400 = vmatprep.subr.mxu0 0.0
      %401 = vmatpush1.msra.mxu0 0.0
      %402 = vmatprep.subr.mxu0 0.0
      %403 = vmatpush1.msra.mxu0 0.0
      %404 = vmatprep.subr.mxu0 0.0
      %405 = vmatpush1.msra.mxu0 0.0
      %406 = vmatprep.subr.mxu0 0.0
      %407 = vmatpush1.msra.mxu0 0.0
      %408 = vmatprep.subr.mxu0 0.0
      %409 = vmatpush1.msra.mxu0 0.0
      %410 = vmatprep.subr.mxu0 0.0
      %411 = vmatpush1.msra.mxu0 0.0
      %412 = vmatprep.subr.mxu0 0.0
      %413 = vmatpush1.msra.mxu0 0.0
      %414 = vmatprep.subr.mxu0 0.0
      %415 = vmatpush1.msra.mxu0 0.0
      %416 = vmatprep.subr.mxu0 0.0
      %417 = vmatpush1.msra.mxu0 0.0
      %418 = vmatprep.subr.mxu0 0.0
      %419 = vmatpush1.msra.mxu0 0.0
      %420 = vmatprep.subr.mxu0 0.0
      %421 = vmatpush1.msra.mxu0 0.0
      %422 = vmatprep.subr.mxu0 0.0
      %423 = vmatpush1.msra.mxu0 0.0
      %424 = vmatprep.subr.mxu0 0.0
      %425 = vmatpush1.msra.mxu0 0.0
      %426 = vmatprep.subr.mxu0 0.0
      %427 = vmatpush1.msra.mxu0 0.0
      %428 = vmatprep.subr.mxu0 0.0
      %429 = vmatpush1.msra.mxu0 0.0
      %430 = vmatprep.subr.mxu0 0.0
      %431 = vmatpush1.msra.mxu0 0.0
      %432 = vmatprep.subr.mxu0 0.0
      %433 = vmatpush1.msra.mxu0 0.0
      %434 = vmatprep.subr.mxu0 0.0
      %435 = vmatpush1.msra.mxu0 0.0
      %436 = vmatprep.subr.mxu0 0.0
      %437 = vmatpush1.msra.mxu0 0.0
      %438 = vmatprep.subr.mxu0 0.0
      %439 = vmatpush1.msra.mxu0 0.0
      %440 = vmatprep.subr.mxu0 0.0
      %441 = vmatpush1.msra.mxu0 0.0
      %442 = vmatprep.mubr.f32.mxu0 0.0
      %443 = vmatmul.mubr.f32.gmra.mrb[0].mxu0 %v376
      %v444 = vpop.f32.mrb[0].mxu0
      %v445 = vadd.f32 %v372, %v444
      %v446 = vpop.f32.mrb[0].mxu0
      %v447 = vadd.f32 %v372, %v446
      %448 = vdwg.mxu0
      %v449 = vmax.f32 %v445, 0.0
      %v450 = vmax.f32 %v447, 0.0
      %v451 = vld [vmem:[%s5] sm:$0x1]
      %v452 = vunpack.c.l.bf16 %v451
      %v453 = vld [vmem:[#allocation2] sm:$0x1]
      %455 = vset.pattern.permute.xlu0 0
      %456 = vperm.xlu0 %455, %v453
      %v457 = vpop.permute.xlu0 %456
      %v459 = vlaneseq
      %v460 = vshrl.u32 %v459, 7
      %v461 = vsub.s32 0, %v460
      %v462 = vrot.slane %v457, %v461
      %v464 = vsel %vm308, %v452, 0
      %466 = vmatprep.subr.mxu0 %v450
      %467 = vmatpush1.msra.mxu0 %v449
      %468 = vmatprep.subr.mxu0 0.0
      %469 = vmatpush1.msra.mxu0 0.0
      %470 = vmatprep.subr.mxu0 0.0
      %471 = vmatpush1.msra.mxu0 0.0
      %472 = vmatprep.subr.mxu0 0.0
      %473 = vmatpush1.msra.mxu0 0.0
      %474 = vmatprep.subr.mxu0 0.0
      %475 = vmatpush1.msra.mxu0 0.0
      %476 = vmatprep.subr.mxu0 0.0
      %477 = vmatpush1.msra.mxu0 0.0
      %478 = vmatprep.subr.mxu0 0.0
      %479 = vmatpush1.msra.mxu0 0.0
      %480 = vmatprep.subr.mxu0 0.0
      %481 = vmatpush1.msra.mxu0 0.0
      %482 = vmatprep.subr.mxu0 0.0
      %483 = vmatpush1.msra.mxu0 0.0
      %484 = vmatprep.subr.mxu0 0.0
      %485 = vmatpush1.msra.mxu0 0.0
      %486 = vmatprep.subr.mxu0 0.0
      %487 = vmatpush1.msra.mxu0 0.0
      %488 = vmatprep.subr.mxu0 0.0
      %489 = vmatpush1.msra.mxu0 0.0
      %490 = vmatprep.subr.mxu0 0.0
      %491 = vmatpush1.msra.mxu0 0.0
      %492 = vmatprep.subr.mxu0 0.0
      %493 = vmatpush1.msra.mxu0 0.0
      %494 = vmatprep.subr.mxu0 0.0
      %495 = vmatpush1.msra.mxu0 0.0
      %496 = vmatprep.subr.mxu0 0.0
      %497 = vmatpush1.msra.mxu0 0.0
      %498 = vmatprep.subr.mxu0 0.0
      %499 = vmatpush1.msra.mxu0 0.0
      %500 = vmatprep.subr.mxu0 0.0
      %501 = vmatpush1.msra.mxu0 0.0
      %502 = vmatprep.subr.mxu0 0.0
      %503 = vmatpush1.msra.mxu0 0.0
      %504 = vmatprep.subr.mxu0 0.0
      %505 = vmatpush1.msra.mxu0 0.0
      %506 = vmatprep.subr.mxu0 0.0
      %507 = vmatpush1.msra.mxu0 0.0
      %508 = vmatprep.subr.mxu0 0.0
      %509 = vmatpush1.msra.mxu0 0.0
      %510 = vmatprep.subr.mxu0 0.0
      %511 = vmatpush1.msra.mxu0 0.0
      %512 = vmatprep.subr.mxu0 0.0
      %513 = vmatpush1.msra.mxu0 0.0
      %514 = vmatprep.subr.mxu0 0.0
      %515 = vmatpush1.msra.mxu0 0.0
      %516 = vmatprep.subr.mxu0 0.0
      %517 = vmatpush1.msra.mxu0 0.0
      %518 = vmatprep.subr.mxu0 0.0
      %519 = vmatpush1.msra.mxu0 0.0
      %520 = vmatprep.subr.mxu0 0.0
      %521 = vmatpush1.msra.mxu0 0.0
      %522 = vmatprep.subr.mxu0 0.0
      %523 = vmatpush1.msra.mxu0 0.0
      %524 = vmatprep.subr.mxu0 0.0
      %525 = vmatpush1.msra.mxu0 0.0
      %526 = vmatprep.subr.mxu0 0.0
      %527 = vmatpush1.msra.mxu0 0.0
      %528 = vmatprep.subr.mxu0 0.0
      %529 = vmatpush1.msra.mxu0 0.0
      %530 = vmatprep.mubr.f32.mxu0 0.0
      %531 = vmatmul.mubr.f32.gmra.mrb[0].mxu0 %v464
      %v532 = vpop.f32.mrb[0].mxu0
      %v533 = vadd.f32 %v462, %v532
      %v534 = vpop.f32.mrb[0].mxu0
      %v535 = vadd.f32 %v462, %v534
      %536 = vdwg.mxu0
      %v537 = vsub.f32 0.0, %v533
      %v538 = vsub.f32 0.0, %v535
      %v539 = vmul.f32 %v537, 1.442695
      %v540 = vpow.pop %v539
      %v541 = vmul.f32 %v538, 1.442695
      %v542 = vpow.pop %v541
      %v543 = vadd.f32 %v540, 1.0
      %v544 = vadd.f32 %v542, 1.0
      %v545 = vrcp.pop %v543
      %v546 = vrcp.pop %v544
      %v549 = vcombine.low %v545, %v546
      %v551 = vunpack.c.l.s4 1966171168
      %v552 = vunpack.c.0.s8 %v551
      %v553 = vlaneseq
      %v554 = vshrl.u32 %v553, 7
      %v555 = vsub.s32 %v552, %v554
      %v556 = vrot.slane %v549, %v555
      %v558 = vunpack.c.l.s4 1966171168
      %v559 = vunpack.c.0.s8 %v558
      %v560 = vlaneseq
      %v561 = vshrl.u32 %v560, 7
      %v562 = vsub.s32 %v559, %v561
      %v563 = vrot.slane %v556, %v562
      %v565 = vlaneseq
      %vm566 = vcmp.ge.s32.totalorder %v565, 0
      %vm567 = vcmp.lt.s32.totalorder %v565, 256
      %vm568 = vmand %vm566, %vm567
      %569 = vst.msk [vmem:[%s280] sm:$0x3] %vm568, %v563
      %s570 = smul.u32 2, %s20
      %p571 = scmp.lt.s32.totalorder %s570, 7
      %s572 = scalar_select %p571, %s570, 7
      %s573 = scalar_lea.vmem %s7, %s572
      // Predicated region
      $region49: #{titanic_forward.1} parent=47 // pred_check
        %p574 = pneg %p190
      $region50: #{titanic_forward.1} parent=47 // pred_check_branch
        %576 = sbr.rel (%p574) target = $region52
      $region51: #{titanic_forward.1} parent=47 // pred_region
        %s577 = smul.u32 2, %s20
      $region52: #{titanic_forward.1} parent=47 // pred_fallthru
        _
    $region48: #{titanic_forward.1} parent=5 // pred_fallthru
      _
    %p578 = scmp.le.s32.totalorder 2, %s15
    // Predicated region
    $region53: #{titanic_forward.1} parent=5 // pred_check
      %p579 = pneg %p578
    $region54: #{titanic_forward.1} parent=5 // pred_check_branch
      %581 = sbr.rel (%p579) target = $region56
    $region55: #{titanic_forward.1} parent=5 // pred_region
      %s582 = ssub.s32 %s15, 2
      // Predicated region
      $region57: #{titanic_forward.1} parent=55 // pred_check
        %p583 = pneg %p196
      $region58: #{titanic_forward.1} parent=55 // pred_check_branch
        %585 = sbr.rel (%p583) target = $region60
      $region59: #{titanic_forward.1} parent=55 // pred_region
        %s586 = smul.u32 2, %s21
        %p587 = scmp.lt.s32.totalorder %s586, 7
        %s588 = scalar_select %p587, %s586, 7
        %s589 = scalar_lea.vmem %s7, %s588
      $region60: #{titanic_forward.1} parent=55 // pred_fallthru
        _
    $region56: #{titanic_forward.1} parent=5 // pred_fallthru
      _
  $region6: #{titanic_forward.1} parent=0 // loop_footer
    %s19 = sadd.s32 1, %s15
  $region7: #{titanic_forward.1} parent=0 // loop_footer_branch
    %14 = sbr.rel target = $region3
  $region8: #{titanic_forward.1} parent=0 // loop_exit
    _

</llo_original>
